<compile_context>
chip_gen: v7x
topology: tpu7x:2x2x1
jax: 0.10.0
libtpu: 0.0.40
codegen_flags: <defaults>
</compile_context>

<pallas_src>
import jax
import jax.numpy as jnp
from jax.experimental import pallas as pl
from jax.experimental.pallas import tpu as pltpu


_LANE = 128      # lane width (last-dim tiling unit)
_SUBLANE = 8     # f32 sublane count (second-to-last-dim tiling unit)


def _round_up(n, m):
    return ((n + m - 1) // m) * m


def _make_encoder_kernel(n_hidden):
    """Fused MLP encoder: n_hidden x (Linear+ReLU) followed by one fused head matmul.

    Ref layout: [x, W_0 .. W_{n_hidden-1}, W_head, b_all, out]
      - weights are pre-transposed / zero-padded to (in_p, out_p), bf16
      - b_all is (n_hidden + 1, max_out_p) f32, zero-padded per row
      - out is (block_B, head_out_p) f32 (lane-dense, split outside the kernel)
    """

    def kernel(*refs):
        x_ref = refs[0]
        w_refs = refs[1:1 + n_hidden + 1]
        b_ref = refs[1 + n_hidden + 1]
        out_ref = refs[-1]

        h = x_ref[...]                                    # bf16 activation tile
        for i in range(n_hidden):
            w = w_refs[i][...]
            n_out = w.shape[1]
            acc = jnp.dot(h, w, preferred_element_type=jnp.float32)
            acc = acc + b_ref[i:i + 1, :n_out]            # f32 bias add
            h = jnp.maximum(acc, 0.0).astype(x_ref.dtype)  # ReLU, back to bf16 for MXU

        w_head = w_refs[n_hidden][...]
        n_out = w_head.shape[1]
        y = jnp.dot(h, w_head, preferred_element_type=jnp.float32)
        y = y + b_ref[n_hidden:n_hidden + 1, :n_out]
        out_ref[...] = y.astype(out_ref.dtype)            # full 128-lane store

    return kernel


def prepare_encoder_params(params, in_features, compute_dtype=jnp.bfloat16):
    """One-time param prep: fuse heads, zero-pad widths to lane multiples, pack biases."""
    hidden = params["hidden"]                  # list of (W: (in, out), b: (1, out))
    wm, bm = params["means"]
    wv, bv = params["log_var"]
    latent = wm.shape[1]

    # Fuse the two heads into a single lane-dense matmul.
    w_head = jnp.concatenate([wm, wv], axis=1)                         # (H, 2*latent)
    b_head = jnp.concatenate([bm.reshape(1, -1), bv.reshape(1, -1)], axis=1)

    layers = [*hidden, (w_head, b_head)]

    ws_padded, bias_rows, out_widths = [], [], []
    for w, b in layers:
        real_in, real_out = w.shape
        in_p = _round_up(real_in, _LANE)
        out_p = _round_up(real_out, _LANE)
        wp = jnp.zeros((in_p, out_p), compute_dtype)
        wp = wp.at[:real_in, :real_out].set(w.astype(compute_dtype))
        ws_padded.append(wp)
        bias_rows.append(b.reshape(-1).astype(jnp.float32))
        out_widths.append(out_p)

    max_w = max(out_widths)
    b_all = jnp.zeros((len(layers), max_w), jnp.float32)
    for i, b in enumerate(bias_rows):
        b_all = b_all.at[i, :b.shape[0]].set(b)

    return {
        "weights": ws_padded,            # bf16, zero-padded (in_p, out_p)
        "b_all": b_all,                  # f32, packed + zero-padded biases
        "latent": latent,
        "in_features": in_features,
        "k_padded": _round_up(in_features, _LANE),
        "head_out_padded": out_widths[-1],
        "compute_dtype": compute_dtype,
    }


def encoder_forward(x, prepared, o_cond=None, *, block_b=256):
    """Pallas implementation of Encoder.forward (MLP arch type)."""
    # Glue (plain JAX): optional conditional concat along channel dim, flatten (NCHW).
    if o_cond is not None:
        x = jnp.concatenate([x, o_cond], axis=1)
    B = x.shape[0]
    orig_dtype = x.dtype
    x2 = x.reshape(B, -1)

    K = prepared["in_features"]
    Kp = prepared["k_padded"]
    latent = prepared["latent"]
    out_p = prepared["head_out_padded"]
    weights = prepared["weights"]
    b_all = prepared["b_all"]
    cdtype = prepared["compute_dtype"]
    n_hidden = len(weights) - 1

    # Pad batch to a sublane multiple (>= 8) and make it divisible by the batch tile.
    Bp = _round_up(max(B, _SUBLANE), _SUBLANE)
    bt = min(block_b, Bp)
    Bp = _round_up(Bp, bt)

    xp = jnp.zeros((Bp, Kp), cdtype)
    xp = xp.at[:B, :K].set(x2.astype(cdtype))

    kernel = _make_encoder_kernel(n_hidden)

    grid = (Bp // bt,)
    in_specs = [pl.BlockSpec((bt, Kp), lambda i: (i, 0))]
    for w in weights:
        in_specs.append(pl.BlockSpec(w.shape, lambda i: (0, 0)))       # resident weights
    in_specs.append(pl.BlockSpec(b_all.shape, lambda i: (0, 0)))       # packed biases
    out_specs = pl.BlockSpec((bt, out_p), lambda i: (i, 0))

    flops = sum(2 * Bp * w.shape[0] * w.shape[1] for w in weights)
    bytes_accessed = (
        xp.size * xp.dtype.itemsize
        + sum(w.size * w.dtype.itemsize for w in weights)
        + b_all.size * b_all.dtype.itemsize
        + Bp * out_p * 4
    )

    out = pl.pallas_call(
        kernel,
        out_shape=jax.ShapeDtypeStruct((Bp, out_p), jnp.float32),
        grid=grid,
        in_specs=in_specs,
        out_specs=out_specs,
        compiler_params=pltpu.CompilerParams(dimension_semantics=("parallel",)),
        cost_estimate=pl.CostEstimate(
            flops=flops, transcendentals=0, bytes_accessed=bytes_accessed),
    )(xp, *weights, b_all)

    means = out[:B, :latent].astype(orig_dtype)
    log_vars = out[:B, latent:2 * latent].astype(orig_dtype)
    return means, log_vars


def init_linear(key, in_size, out_size):
    """Deterministic nn.Linear-style init (uniform +/- 1/sqrt(fan_in)).

    Weight is stored transposed as (in, out); bias as (1, out).
    """
    kw, kb = jax.random.split(key)
    bound = 1.0 / float(in_size) ** 0.5
    w = jax.random.uniform(kw, (in_size, out_size), jnp.float32, -bound, bound)
    b = jax.random.uniform(kb, (1, out_size), jnp.float32, -bound, bound)
    return w, b


if __name__ == "__main__":
    # Encoder(etype="mlp-256-64", latent_size=32, conditional=False, ...)
    layer_sizes = [256, 64]
    latent_size = 32

    key = jax.random.PRNGKey(0)
    k_x, k_hidden, k_means, k_logvar = jax.random.split(key, 4)

    # Input: NCHW image (2, 1, 16, 16) -> flattened feature size 256.
    x = jax.random.normal(k_x, (2, 1, 16, 16), jnp.float32)

    hidden_keys = jax.random.split(k_hidden, len(layer_sizes) - 1)
    hidden = [
        init_linear(hidden_keys[i], in_s, out_s)
        for i, (in_s, out_s) in enumerate(zip(layer_sizes[:-1], layer_sizes[1:]))
    ]
    params = {
        "hidden": hidden,
        "means": init_linear(k_means, layer_sizes[-1], latent_size),
        "log_var": init_linear(k_logvar, layer_sizes[-1], latent_size),
    }

    prepared = prepare_encoder_params(params, in_features=layer_sizes[0])
    means, log_vars = encoder_forward(x, prepared)
    jax.block_until_ready((means, log_vars))

    # Pure-JAX references to validate semantics.
    x2 = x.reshape(x.shape[0], -1)

    # (a) bf16-matched reference (same compute precision as the kernel).
    hb = x2.astype(jnp.bfloat16)
    for w, b in hidden:
        hb = jnp.maximum(
            jnp.dot(hb, w.astype(jnp.bfloat16), preferred_element_type=jnp.float32) + b,
            0.0,
        ).astype(jnp.bfloat16)
    means_bref = jnp.dot(hb, params["means"][0].astype(jnp.bfloat16),
                         preferred_element_type=jnp.float32) + params["means"][1]
    logvar_bref = jnp.dot(hb, params["log_var"][0].astype(jnp.bfloat16),
                          preferred_element_type=jnp.float32) + params["log_var"][1]

    # (b) full-f32 reference (PyTorch semantics).
    hf = x2
    for w, b in hidden:
        hf = jnp.maximum(hf @ w + b, 0.0)
    means_fref = hf @ params["means"][0] + params["means"][1]
    logvar_fref = hf @ params["log_var"][0] + params["log_var"][1]

    assert means.shape == (2, latent_size) and log_vars.shape == (2, latent_size)
    assert jnp.allclose(means, means_bref, rtol=1e-2, atol=1e-2)
    assert jnp.allclose(log_vars, logvar_bref, rtol=1e-2, atol=1e-2)
    assert jnp.allclose(means, means_fref, rtol=3e-2, atol=3e-2)
    assert jnp.allclose(log_vars, logvar_fref, rtol=3e-2, atol=3e-2)

    # TODO(synk): 'cnn' arch type (Conv2d/BatchNorm2d/LeakyReLU stack) is not
    # implemented here; this script realizes the 'mlp' arch path.
    print("KERNEL_OK")
</pallas_src>

<mosaic_0001>
module attributes {stable_mosaic.version = 11 : i64} {
  func.func @kernel(%arg0: i32, %arg1: memref<8x256xbf16, #tpu.memory_space<vmem>>, %arg2: memref<256x128xbf16, #tpu.memory_space<vmem>>, %arg3: memref<128x128xbf16, #tpu.memory_space<vmem>>, %arg4: memref<2x128xf32, #tpu.memory_space<vmem>>, %arg5: memref<8x128xf32, #tpu.memory_space<vmem>>) attributes {dimension_semantics = [#tpu.dimension_semantics<parallel>], iteration_bounds = array<i64: 1>, scalar_prefetch = 0 : i64, scratch_operands = 0 : i64, tpu.core_type = #tpu.core_type<tc>, window_params = [{transform_indices = @transform_0, window_bounds = array<i64: 8, 256>}, {pipeline_mode = #tpu.pipeline_mode<synchronous>, transform_indices = @transform_1, window_bounds = array<i64: 256, 128>}, {pipeline_mode = #tpu.pipeline_mode<synchronous>, transform_indices = @transform_2, window_bounds = array<i64: 128, 128>}, {pipeline_mode = #tpu.pipeline_mode<synchronous>, transform_indices = @transform_3, window_bounds = array<i64: 2, 128>}, {transform_indices = @transform_4, window_bounds = array<i64: 8, 128>}]} {
    %c0 = arith.constant 0 : index
    %c0_0 = arith.constant 0 : index
    %0 = vector.load %arg1[%c0, %c0_0] : memref<8x256xbf16, #tpu.memory_space<vmem>>, vector<8x256xbf16>
    %c0_1 = arith.constant 0 : index
    %c0_2 = arith.constant 0 : index
    %1 = vector.load %arg2[%c0_1, %c0_2] : memref<256x128xbf16, #tpu.memory_space<vmem>>, vector<256x128xbf16>
    %cst = arith.constant dense<0.000000e+00> : vector<8x128xf32>
    %2 = tpu.matmul %0, %1, %cst {dimension_numbers = #tpu.dot_dimension_numbers<[1], [0], [0], [1], [0, 0, 1, 1], [], []>} : vector<8x256xbf16>, vector<256x128xbf16>, vector<8x128xf32> -> vector<8x128xf32>
    %c0_3 = arith.constant 0 : index
    %c0_4 = arith.constant 0 : index
    %3 = vector.load %arg4[%c0_3, %c0_4] : memref<2x128xf32, #tpu.memory_space<vmem>>, vector<1x128xf32>
    %4 = vector.broadcast %3 : vector<1x128xf32> to vector<8x128xf32>
    %5 = arith.addf %2, %4 : vector<8x128xf32>
    %cst_5 = arith.constant 0.000000e+00 : f32
    %6 = vector.broadcast %cst_5 : f32 to vector<8x128xf32>
    %7 = arith.maximumf %5, %6 : vector<8x128xf32>
    %8 = arith.truncf %7 : vector<8x128xf32> to vector<8x128xbf16>
    %c0_6 = arith.constant 0 : index
    %c0_7 = arith.constant 0 : index
    %9 = vector.load %arg3[%c0_6, %c0_7] : memref<128x128xbf16, #tpu.memory_space<vmem>>, vector<128x128xbf16>
    %cst_8 = arith.constant dense<0.000000e+00> : vector<8x128xf32>
    %10 = tpu.matmul %8, %9, %cst_8 {dimension_numbers = #tpu.dot_dimension_numbers<[1], [0], [0], [1], [0, 0, 1, 1], [], []>} : vector<8x128xbf16>, vector<128x128xbf16>, vector<8x128xf32> -> vector<8x128xf32>
    %c1 = arith.constant 1 : index
    %c0_9 = arith.constant 0 : index
    %11 = vector.load %arg4[%c1, %c0_9] : memref<2x128xf32, #tpu.memory_space<vmem>>, vector<1x128xf32>
    %12 = vector.broadcast %11 : vector<1x128xf32> to vector<8x128xf32>
    %13 = arith.addf %10, %12 : vector<8x128xf32>
    %c0_10 = arith.constant 0 : index
    %c0_11 = arith.constant 0 : index
    %14 = vector.load %arg5[%c0_10, %c0_11] : memref<8x128xf32, #tpu.memory_space<vmem>>, vector<8x128xf32>
    tpu.vector_store %arg5[%c0_10, %c0_11], %13 {strides = array<i32>} : memref<8x128xf32, #tpu.memory_space<vmem>>, vector<8x128xf32>,
    return
  }
  func.func @transform_0(%arg0: i32) -> (i32, i32) {
    %c0_i32 = arith.constant 0 : i32
    %c0_i32_0 = arith.constant 0 : i32
    return %arg0, %c0_i32 : i32, i32
  }
  func.func @transform_1(%arg0: i32) -> (i32, i32) {
    %c0_i32 = arith.constant 0 : i32
    %c0_i32_0 = arith.constant 0 : i32
    %c0_i32_1 = arith.constant 0 : i32
    return %c0_i32, %c0_i32_0 : i32, i32
  }
  func.func @transform_2(%arg0: i32) -> (i32, i32) {
    %c0_i32 = arith.constant 0 : i32
    %c0_i32_0 = arith.constant 0 : i32
    %c0_i32_1 = arith.constant 0 : i32
    return %c0_i32, %c0_i32_0 : i32, i32
  }
  func.func @transform_3(%arg0: i32) -> (i32, i32) {
    %c0_i32 = arith.constant 0 : i32
    %c0_i32_0 = arith.constant 0 : i32
    %c0_i32_1 = arith.constant 0 : i32
    return %c0_i32, %c0_i32_0 : i32, i32
  }
  func.func @transform_4(%arg0: i32) -> (i32, i32) {
    %c0_i32 = arith.constant 0 : i32
    %c0_i32_0 = arith.constant 0 : i32
    return %arg0, %c0_i32 : i32, i32
  }
}

</mosaic_0001>

<llo_original>
// kernel: tpu_custom_call.1
$region0: #{tpu_custom_call.1}
  #allocation0 [shape = 'u32[]', space=smem, size = 0x4, offset = 0x4, fixed_abs, tag = 'smem constant byte address 0x4 - core index']
  #allocation1 [shape = 'u32[144,128]{1,0:T(1,128)}', space=vmem, size = 0x12000, scoped, tag = 'internal scratch']
  %s0 = inlined_call_operand.hbm [shape: bf16[8,256], index: 0, kind: input, shape index: {}]
  %s1 = inlined_call_operand.hbm [shape: bf16[256,128], index: 1, kind: input, shape index: {}]
  %s2 = inlined_call_operand.hbm [shape: bf16[128,128], index: 2, kind: input, shape index: {}]
  %s3 = inlined_call_operand.vmem [shape: f32[2,128], index: 3, kind: input, shape index: {}]
  %s4 = inlined_call_operand.hbm [shape: f32[8,128], index: 4, kind: output, shape index: {}]
  %s5 = sld [smem:[#allocation0]]
  $region38: #{tpu_custom_call.1} parent=0
    _
  %s7 = ssub.s32 1, %s5
  %s8 = scalar_select 0, %s7, %s5
  $region1: #{tpu_custom_call.1} parent=0
    #allocation2 [shape = 'u8[4096]{0}', space=vmem, size = 0x1000, scoped, tag = 'input window, operand 0, single buffered']
    #allocation3 [shape = 's32[1]{0}', space=sflag, size = 0x4, scoped, tag = 'scoped memory for tpu_custom_call.1']
    #allocation4 [shape = 's32[1]{0}', space=sflag, size = 0x4, scoped, tag = 'scoped memory for tpu_custom_call.1']
    #allocation5 [shape = 'u8[65536]{0}', space=vmem, size = 0x10000, scoped, tag = 'input window, operand 1, single buffered']
    #allocation6 [shape = 's32[1]{0}', space=sflag, size = 0x4, scoped, tag = 'scoped memory for tpu_custom_call.1']
    #allocation7 [shape = 'u8[32768]{0}', space=vmem, size = 0x8000, scoped, tag = 'input window, operand 2, single buffered']
    #allocation8 [shape = 'u8[4096]{0}', space=vmem, size = 0x1000, scoped, tag = 'output window, operand 0, single buffered']
    %9 = vsyncpa [#allocation3], 0
    %10 = vsyncpa [#allocation6], 0
    %11 = vsyncpa [#allocation4], 0
    // Predicated region
    $region2: #{tpu_custom_call.1} parent=1 // pred_check
      _
    $region3: #{tpu_custom_call.1} parent=1 // pred_check_branch
      %13 = sbr.rel (0) target = $region5
    $region4: #{tpu_custom_call.1} parent=1 // pred_region
      %s15 = ssub.s32 128, 128
      %16 = vsyncadd [#allocation3], %s15
      %s18 = sshll.u32 [#allocation2], 4
      %s19 = int_to_ptr.vmem [resolvable:$true] %s18
      %21 = dma.hbm_to_vmem [thread:$0]  %s0, 128, %s19, [#allocation3]
    $region5: #{tpu_custom_call.1} parent=1 // pred_fallthru
      _
    // Predicated region
    $region6: #{tpu_custom_call.1} parent=1 // pred_check
      _
    $region7: #{tpu_custom_call.1} parent=1 // pred_check_branch
      %23 = sbr.rel (0) target = $region9
    $region8: #{tpu_custom_call.1} parent=1 // pred_region
      %s25 = ssub.s32 2048, 2048
      %26 = vsyncadd [#allocation6], %s25
      %s27 = sshll.u32 [#allocation5], 4
      %s28 = int_to_ptr.vmem [resolvable:$true] %s27
      %33 = dma.hbm_to_vmem [thread:$0]  %s1, 2048, %s28, [#allocation6], 64, 64, 4
    $region9: #{tpu_custom_call.1} parent=1 // pred_fallthru
      _
    // Predicated region
    $region10: #{tpu_custom_call.1} parent=1 // pred_check
      _
    $region11: #{tpu_custom_call.1} parent=1 // pred_check_branch
      %35 = sbr.rel (0) target = $region13
    $region12: #{tpu_custom_call.1} parent=1 // pred_region
      %s37 = ssub.s32 1024, 1024
      %38 = vsyncadd [#allocation6], %s37
      %s39 = sshll.u32 [#allocation7], 4
      %s40 = int_to_ptr.vmem [resolvable:$true] %s39
      %45 = dma.hbm_to_vmem [thread:$0]  %s2, 1024, %s40, [#allocation6], 64, 64, 4
    $region13: #{tpu_custom_call.1} parent=1 // pred_fallthru
      _
    // Predicated region
    $region14: #{tpu_custom_call.1} parent=1 // pred_check
      _
    $region15: #{tpu_custom_call.1} parent=1 // pred_check_branch
      %47 = sbr.rel (0) target = $region17
    $region16: #{tpu_custom_call.1} parent=1 // pred_region
      _
    $region17: #{tpu_custom_call.1} parent=1 // pred_fallthru
      _
    // Predicated region
    $region18: #{tpu_custom_call.1} parent=1 // pred_check
      _
    $region19: #{tpu_custom_call.1} parent=1 // pred_check_branch
      %49 = sbr.rel (0) target = $region21
    $region20: #{tpu_custom_call.1} parent=1 // pred_region
      %50 = dma.done [#allocation3], 128
    $region21: #{tpu_custom_call.1} parent=1 // pred_fallthru
      _
    // Predicated region
    $region22: #{tpu_custom_call.1} parent=1 // pred_check
      _
    $region23: #{tpu_custom_call.1} parent=1 // pred_check_branch
      %52 = sbr.rel (0) target = $region25
    $region24: #{tpu_custom_call.1} parent=1 // pred_region
      %53 = dma.done [#allocation6], 2048
    $region25: #{tpu_custom_call.1} parent=1 // pred_fallthru
      _
    // Predicated region
    $region26: #{tpu_custom_call.1} parent=1 // pred_check
      _
    $region27: #{tpu_custom_call.1} parent=1 // pred_check_branch
      %55 = sbr.rel (0) target = $region29
    $region28: #{tpu_custom_call.1} parent=1 // pred_region
      %56 = dma.done [#allocation6], 1024
    $region29: #{tpu_custom_call.1} parent=1 // pred_fallthru
      _
    %v58 = vld [vmem:[#allocation2] sm:$0xff]
    %v59 = vld [vmem:[#allocation5] sm:$0xf]
    %v60 = vld [vmem:[#allocation5 + $0x4] sm:$0xf]
    %v61 = vld [vmem:[#allocation5 + $0x8] sm:$0xf]
    %v62 = vld [vmem:[#allocation5 + $0xc] sm:$0xf]
    %v63 = vld [vmem:[#allocation5 + $0x10] sm:$0xf]
    %v64 = vld [vmem:[#allocation5 + $0x14] sm:$0xf]
    %v65 = vld [vmem:[#allocation5 + $0x18] sm:$0xf]
    %v66 = vld [vmem:[#allocation5 + $0x1c] sm:$0xf]
    %v67 = vld [vmem:[#allocation5 + $0x20] sm:$0xf]
    %v68 = vld [vmem:[#allocation5 + $0x24] sm:$0xf]
    %v69 = vld [vmem:[#allocation5 + $0x28] sm:$0xf]
    %v70 = vld [vmem:[#allocation5 + $0x2c] sm:$0xf]
    %v71 = vld [vmem:[#allocation5 + $0x30] sm:$0xf]
    %v72 = vld [vmem:[#allocation5 + $0x34] sm:$0xf]
    %v73 = vld [vmem:[#allocation5 + $0x38] sm:$0xf]
    %v74 = vld [vmem:[#allocation5 + $0x3c] sm:$0xf]
    %v75 = vld [vmem:[#allocation5 + $0x40] sm:$0xf]
    %v76 = vld [vmem:[#allocation5 + $0x44] sm:$0xf]
    %v77 = vld [vmem:[#allocation5 + $0x48] sm:$0xf]
    %v78 = vld [vmem:[#allocation5 + $0x4c] sm:$0xf]
    %v79 = vld [vmem:[#allocation5 + $0x50] sm:$0xf]
    %v80 = vld [vmem:[#allocation5 + $0x54] sm:$0xf]
    %v81 = vld [vmem:[#allocation5 + $0x58] sm:$0xf]
    %v82 = vld [vmem:[#allocation5 + $0x5c] sm:$0xf]
    %v83 = vld [vmem:[#allocation5 + $0x60] sm:$0xf]
    %v84 = vld [vmem:[#allocation5 + $0x64] sm:$0xf]
    %v85 = vld [vmem:[#allocation5 + $0x68] sm:$0xf]
    %v86 = vld [vmem:[#allocation5 + $0x6c] sm:$0xf]
    %v87 = vld [vmem:[#allocation5 + $0x70] sm:$0xf]
    %v88 = vld [vmem:[#allocation5 + $0x74] sm:$0xf]
    %v89 = vld [vmem:[#allocation5 + $0x78] sm:$0xf]
    %v90 = vld [vmem:[#allocation5 + $0x7c] sm:$0xf]
    %v91 = vld [vmem:[%s3] sm:$0x1]
    %v92 = vlaneseq
    %v93 = vshrl.u32 %v92, 7
    %v94 = vsub.s32 0, %v93
    %v95 = vrot.slane %v91, %v94
    %v97 = vunpack.c.l.b16 %v58
    %v98 = vunpack.c.h.b16 %v58
    %v99 = vpack.c.b16 %v97, %v97
    %v100 = vpack.c.b16 %v98, %v98
    %v135 = vunpack.c.l.b16 %v59
    %v136 = vunpack.c.l.b16 %v60
    %v137 = vunpack.c.l.b16 %v61
    %v138 = vunpack.c.l.b16 %v62
    %v139 = vunpack.c.l.b16 %v63
    %v140 = vunpack.c.l.b16 %v64
    %v141 = vunpack.c.l.b16 %v65
    %v142 = vunpack.c.l.b16 %v66
    %v143 = vunpack.c.l.b16 %v67
    %v144 = vunpack.c.l.b16 %v68
    %v145 = vunpack.c.l.b16 %v69
    %v146 = vunpack.c.l.b16 %v70
    %v147 = vunpack.c.l.b16 %v71
    %v148 = vunpack.c.l.b16 %v72
    %v149 = vunpack.c.l.b16 %v73
    %v150 = vunpack.c.l.b16 %v74
    %v151 = vunpack.c.l.b16 %v75
    %v152 = vunpack.c.l.b16 %v76
    %v153 = vunpack.c.l.b16 %v77
    %v154 = vunpack.c.l.b16 %v78
    %v155 = vunpack.c.l.b16 %v79
    %v156 = vunpack.c.l.b16 %v80
    %v157 = vunpack.c.l.b16 %v81
    %v158 = vunpack.c.l.b16 %v82
    %v159 = vunpack.c.l.b16 %v83
    %v160 = vunpack.c.l.b16 %v84
    %v161 = vunpack.c.l.b16 %v85
    %v162 = vunpack.c.l.b16 %v86
    %v163 = vunpack.c.l.b16 %v87
    %v164 = vunpack.c.l.b16 %v88
    %v165 = vunpack.c.l.b16 %v89
    %v166 = vunpack.c.l.b16 %v90
    %v167 = vpack.c.b16 %v136, %v135
    %v168 = vpack.c.b16 %v138, %v137
    %v169 = vpack.c.b16 %v140, %v139
    %v170 = vpack.c.b16 %v142, %v141
    %v171 = vpack.c.b16 %v144, %v143
    %v172 = vpack.c.b16 %v146, %v145
    %v173 = vpack.c.b16 %v148, %v147
    %v174 = vpack.c.b16 %v150, %v149
    %v175 = vpack.c.b16 %v152, %v151
    %v176 = vpack.c.b16 %v154, %v153
    %v177 = vpack.c.b16 %v156, %v155
    %v178 = vpack.c.b16 %v158, %v157
    %v179 = vpack.c.b16 %v160, %v159
    %v180 = vpack.c.b16 %v162, %v161
    %v181 = vpack.c.b16 %v164, %v163
    %v182 = vpack.c.b16 %v166, %v165
    %199 = vmatprep.subr.bf16.mxu0 0
    %200 = vmatpush1.bf16.msra.mxu0 %v167
    %201 = vmatprep.subr.bf16.mxu0 0
    %202 = vmatpush1.bf16.msra.mxu0 %v168
    %203 = vmatprep.subr.bf16.mxu0 0
    %204 = vmatpush1.bf16.msra.mxu0 %v169
    %205 = vmatprep.subr.bf16.mxu0 0
    %206 = vmatpush1.bf16.msra.mxu0 %v170
    %207 = vmatprep.subr.bf16.mxu0 0
    %208 = vmatpush1.bf16.msra.mxu0 %v171
    %209 = vmatprep.subr.bf16.mxu0 0
    %210 = vmatpush1.bf16.msra.mxu0 %v172
    %211 = vmatprep.subr.bf16.mxu0 0
    %212 = vmatpush1.bf16.msra.mxu0 %v173
    %213 = vmatprep.subr.bf16.mxu0 0
    %214 = vmatpush1.bf16.msra.mxu0 %v174
    %215 = vmatprep.subr.bf16.mxu0 0
    %216 = vmatpush1.bf16.msra.mxu0 %v175
    %217 = vmatprep.subr.bf16.mxu0 0
    %218 = vmatpush1.bf16.msra.mxu0 %v176
    %219 = vmatprep.subr.bf16.mxu0 0
    %220 = vmatpush1.bf16.msra.mxu0 %v177
    %221 = vmatprep.subr.bf16.mxu0 0
    %222 = vmatpush1.bf16.msra.mxu0 %v178
    %223 = vmatprep.subr.bf16.mxu0 0
    %224 = vmatpush1.bf16.msra.mxu0 %v179
    %225 = vmatprep.subr.bf16.mxu0 0
    %226 = vmatpush1.bf16.msra.mxu0 %v180
    %227 = vmatprep.subr.bf16.mxu0 0
    %228 = vmatpush1.bf16.msra.mxu0 %v181
    %229 = vmatprep.subr.bf16.mxu0 0
    %230 = vmatpush1.bf16.msra.mxu0 %v182
    %231 = vmatprep.mubr.bf16.mxu0 %v100
    %232 = vmatmul.mubr.bf16.gmra.mrb[0].mxu0 %v99
    %v233 = vpop.f32.mrb[0].mxu0
    %v234 = vadd.f32 %v95, %v233
    %v235 = vpop.f32.mrb[0].mxu0
    %v236 = vpop.f32.mrb[0].mxu0
    %v237 = vpop.f32.mrb[0].mxu0
    %238 = vdwg.mxu0
    %v239 = vmax.f32 %v234, 0.0
    %v240 = vpack.c.bf16 %v239, %v239
    %v241 = vld [vmem:[#allocation7] sm:$0xf]
    %v242 = vld [vmem:[#allocation7 + $0x4] sm:$0xf]
    %v243 = vld [vmem:[#allocation7 + $0x8] sm:$0xf]
    %v244 = vld [vmem:[#allocation7 + $0xc] sm:$0xf]
    %v245 = vld [vmem:[#allocation7 + $0x10] sm:$0xf]
    %v246 = vld [vmem:[#allocation7 + $0x14] sm:$0xf]
    %v247 = vld [vmem:[#allocation7 + $0x18] sm:$0xf]
    %v248 = vld [vmem:[#allocation7 + $0x1c] sm:$0xf]
    %v249 = vld [vmem:[#allocation7 + $0x20] sm:$0xf]
    %v250 = vld [vmem:[#allocation7 + $0x24] sm:$0xf]
    %v251 = vld [vmem:[#allocation7 + $0x28] sm:$0xf]
    %v252 = vld [vmem:[#allocation7 + $0x2c] sm:$0xf]
    %v253 = vld [vmem:[#allocation7 + $0x30] sm:$0xf]
    %v254 = vld [vmem:[#allocation7 + $0x34] sm:$0xf]
    %v255 = vld [vmem:[#allocation7 + $0x38] sm:$0xf]
    %v256 = vld [vmem:[#allocation7 + $0x3c] sm:$0xf]
    %v257 = vld [vmem:[%s3 + $0x1] sm:$0x1]
    %v258 = vlaneseq
    %v259 = vshrl.u32 %v258, 7
    %v260 = vsub.s32 0, %v259
    %v261 = vrot.slane %v257, %v260
    %v278 = vunpack.c.l.b16 %v241
    %v279 = vunpack.c.l.b16 %v242
    %v280 = vunpack.c.l.b16 %v243
    %v281 = vunpack.c.l.b16 %v244
    %v282 = vunpack.c.l.b16 %v245
    %v283 = vunpack.c.l.b16 %v246
    %v284 = vunpack.c.l.b16 %v247
    %v285 = vunpack.c.l.b16 %v248
    %v286 = vunpack.c.l.b16 %v249
    %v287 = vunpack.c.l.b16 %v250
    %v288 = vunpack.c.l.b16 %v251
    %v289 = vunpack.c.l.b16 %v252
    %v290 = vunpack.c.l.b16 %v253
    %v291 = vunpack.c.l.b16 %v254
    %v292 = vunpack.c.l.b16 %v255
    %v293 = vunpack.c.l.b16 %v256
    %v294 = vpack.c.b16 %v279, %v278
    %v295 = vpack.c.b16 %v281, %v280
    %v296 = vpack.c.b16 %v283, %v282
    %v297 = vpack.c.b16 %v285, %v284
    %v298 = vpack.c.b16 %v287, %v286
    %v299 = vpack.c.b16 %v289, %v288
    %v300 = vpack.c.b16 %v291, %v290
    %v301 = vpack.c.b16 %v293, %v292
    %310 = vmatprep.subr.bf16.mxu0 0
    %311 = vmatpush1.bf16.msra.mxu0 %v294
    %312 = vmatprep.subr.bf16.mxu0 0
    %313 = vmatpush1.bf16.msra.mxu0 %v295
    %314 = vmatprep.subr.bf16.mxu0 0
    %315 = vmatpush1.bf16.msra.mxu0 %v296
    %316 = vmatprep.subr.bf16.mxu0 0
    %317 = vmatpush1.bf16.msra.mxu0 %v297
    %318 = vmatprep.subr.bf16.mxu0 0
    %319 = vmatpush1.bf16.msra.mxu0 %v298
    %320 = vmatprep.subr.bf16.mxu0 0
    %321 = vmatpush1.bf16.msra.mxu0 %v299
    %322 = vmatprep.subr.bf16.mxu0 0
    %323 = vmatpush1.bf16.msra.mxu0 %v300
    %324 = vmatprep.subr.bf16.mxu0 0
    %325 = vmatpush1.bf16.msra.mxu0 %v301
    %326 = vmatprep.subr.bf16.mxu0 0
    %327 = vmatpush1.bf16.msra.mxu0 0
    %328 = vmatprep.subr.bf16.mxu0 0
    %329 = vmatpush1.bf16.msra.mxu0 0
    %330 = vmatprep.subr.bf16.mxu0 0
    %331 = vmatpush1.bf16.msra.mxu0 0
    %332 = vmatprep.subr.bf16.mxu0 0
    %333 = vmatpush1.bf16.msra.mxu0 0
    %334 = vmatprep.subr.bf16.mxu0 0
    %335 = vmatpush1.bf16.msra.mxu0 0
    %336 = vmatprep.subr.bf16.mxu0 0
    %337 = vmatpush1.bf16.msra.mxu0 0
    %338 = vmatprep.subr.bf16.mxu0 0
    %339 = vmatpush1.bf16.msra.mxu0 0
    %340 = vmatprep.subr.bf16.mxu0 0
    %341 = vmatpush1.bf16.msra.mxu0 0
    %342 = vmatprep.mubr.bf16.mxu0 0
    %343 = vmatmul.mubr.bf16.gmra.mrb[0].mxu0 %v240
    %v344 = vpop.f32.mrb[0].mxu0
    %v345 = vadd.f32 %v261, %v344
    %v346 = vpop.f32.mrb[0].mxu0
    %v347 = vpop.f32.mrb[0].mxu0
    %v348 = vpop.f32.mrb[0].mxu0
    %349 = vdwg.mxu0
    %350 = vst [vmem:[#allocation8] sm:$0xff] %v345
    // Predicated region
    $region30: #{tpu_custom_call.1} parent=1 // pred_check
      _
    $region31: #{tpu_custom_call.1} parent=1 // pred_check_branch
      %352 = sbr.rel (0) target = $region33
    $region32: #{tpu_custom_call.1} parent=1 // pred_region
      %s354 = ssub.s32 128, 128
      %355 = vsyncadd [#allocation4], %s354
      %s357 = sshll.u32 [#allocation8], 4
      %s358 = int_to_ptr.vmem [resolvable:$true] %s357
      %360 = dma.vmem_to_hbm [thread:$0]  %s358, 128, %s4, [#allocation4]
    $region33: #{tpu_custom_call.1} parent=1 // pred_fallthru
      _
    // Predicated region
    $region34: #{tpu_custom_call.1} parent=1 // pred_check
      _
    $region35: #{tpu_custom_call.1} parent=1 // pred_check_branch
      %362 = sbr.rel (0) target = $region37
    $region36: #{tpu_custom_call.1} parent=1 // pred_region
      %363 = dma.done [#allocation4], 128
    $region37: #{tpu_custom_call.1} parent=1 // pred_fallthru
      _
    %364 = vsyncpa [#allocation3], 1
    %365 = vsyncpa [#allocation6], 1
    %366 = vsyncpa [#allocation4], 1

</llo_original>
